<compile_context>
chip_gen: v6e
topology: v6e:2x2x1
jax: 0.10.0
libtpu: 0.0.40
codegen_flags: <defaults>
</compile_context>

<pallas_src>
import functools
import math

import jax
import jax.numpy as jnp
from jax import lax
from jax.experimental import pallas as pl
from jax.experimental.pallas import tpu as pltpu


def _attn_kernel(x_ref, wqkv_ref, bqkv_ref, o_ref, *, H, hs, scale, mxu_dtype):
    # x_ref:    (1, H, S, hs)   (view-style head split, already in mxu_dtype)
    # wqkv_ref: (H, hs, 3*hs)   pre-transposed + fused [Wq^T | Wk^T | Wv^T]
    # bqkv_ref: (H, 1, 3*hs)    fused [bq | bk | bv] (f32)
    # o_ref:    (1, S, D)       D = H * hs
    outs = []
    for h in range(H):  # static unroll over heads
        y = x_ref[0, h]          # (S, hs)
        w = wqkv_ref[h]          # (hs, 3*hs)
        b = bqkv_ref[h]          # (1, 3*hs)

        # Fused Q/K/V projection: y @ [Wq^T|Wk^T|Wv^T] + [bq|bk|bv]
        qkv = jnp.dot(y, w, preferred_element_type=jnp.float32) + b  # (S, 3hs) f32

        q = qkv[:, 0 * hs:1 * hs] * scale   # fold 1/sqrt(D/H) into q
        k = qkv[:, 1 * hs:2 * hs]
        v = qkv[:, 2 * hs:3 * hs]

        # scores = (scale*q) @ k^T without materializing a transpose of k
        s = lax.dot_general(
            q.astype(mxu_dtype), k.astype(mxu_dtype),
            dimension_numbers=(((1,), (1,)), ((), ())),
            preferred_element_type=jnp.float32)            # (S, S) f32

        # numerically stabilized softmax along the last axis (f32)
        s = s - jnp.max(s, axis=-1, keepdims=True)
        p = jnp.exp(s)
        p = p * pl.reciprocal(jnp.sum(p, axis=-1, keepdims=True), approx=True)

        # attention @ val
        o = jnp.dot(p.astype(mxu_dtype), v.astype(mxu_dtype),
                    preferred_element_type=jnp.float32)    # (S, hs) f32
        outs.append(o)

    # torch.cat(answer, dim=-1): one full-width (S, D) store per grid step.
    o_ref[0] = jnp.concatenate(outs, axis=-1).astype(o_ref.dtype)


def attention_block(x, wq, wk, wv, bq, bk, bv, *, D, H,
                    mxu_dtype=jnp.float32):
    """x: (B, S, D). Per-head PyTorch Linear params stacked:
    w*: (H, hs, hs) with (out,in) layout, b*: (H, hs)."""
    B, S, Dim = x.shape
    assert Dim == D and D % H == 0
    hs = D // H
    out_dtype = x.dtype
    scale = 1.0 / math.sqrt(D / H)           # static Python scalar

    # PyTorch .view(B, H, S, hs): a raw reshape of the contiguous buffer.
    x_heads = x.reshape(B, H, S, hs).astype(mxu_dtype)

    # Pre-transpose (out,in)->(in,out) and fuse Q|K|V along the output dim.
    wqkv_t = jnp.concatenate(
        [jnp.swapaxes(wq, -1, -2),
         jnp.swapaxes(wk, -1, -2),
         jnp.swapaxes(wv, -1, -2)], axis=-1).astype(mxu_dtype)   # (H, hs, 3hs)
    bqkv = jnp.concatenate([bq, bk, bv], axis=-1).reshape(H, 1, 3 * hs)
    bqkv = bqkv.astype(jnp.float32)                              # (H, 1, 3hs)

    kernel = functools.partial(_attn_kernel, H=H, hs=hs, scale=scale,
                               mxu_dtype=mxu_dtype)

    out = pl.pallas_call(
        kernel,
        out_shape=jax.ShapeDtypeStruct((B, S, D), out_dtype),
        grid_spec=pltpu.PrefetchScalarGridSpec(
            num_scalar_prefetch=0,
            grid=(B,),
            in_specs=[
                # all heads of one batch row per step
                pl.BlockSpec((1, H, S, hs), lambda b: (b, 0, 0, 0)),
                # weights/biases: constant block index -> stay resident in VMEM
                pl.BlockSpec((H, hs, 3 * hs), lambda b: (0, 0, 0)),
                pl.BlockSpec((H, 1, 3 * hs), lambda b: (0, 0, 0)),
            ],
            # concatenated head outputs written directly as (1, S, D)
            out_specs=pl.BlockSpec((1, S, D), lambda b: (b, 0, 0)),
        ),
        compiler_params=pltpu.CompilerParams(
            dimension_semantics=("parallel",)),
    )(x_heads, wqkv_t, bqkv)
    return out


def _reference(x, wq, wk, wv, bq, bk, bv, *, D, H):
    """Plain-JAX reference mirroring the PyTorch forward."""
    B, S, Dim = x.shape
    hs = D // H
    xh = x.reshape(B, H, S, hs)
    outs = []
    scale = 1.0 / jnp.sqrt(jnp.float32(D / H))
    for i in range(H):
        y = xh[:, i]
        q = y @ wq[i].T + bq[i]
        k = y @ wk[i].T + bk[i]
        v = y @ wv[i].T + bv[i]
        s = (q @ jnp.swapaxes(k, -2, -1)) * scale
        p = jax.nn.softmax(s, axis=-1)
        outs.append(p @ v)
    return jnp.concatenate(outs, axis=-1)


if __name__ == "__main__":
    B, S, D, H = 2, 8, 32, 2
    hs = D // H

    key = jax.random.PRNGKey(0)
    kx, kwq, kwk, kwv, kbq, kbk, kbv = jax.random.split(key, 7)

    # Deterministic synthetic parameters (PyTorch Linear-style uniform init).
    bound = 1.0 / math.sqrt(hs)
    x = jax.random.normal(kx, (B, S, D), dtype=jnp.float32)
    wq = jax.random.uniform(kwq, (H, hs, hs), jnp.float32, -bound, bound)
    wk = jax.random.uniform(kwk, (H, hs, hs), jnp.float32, -bound, bound)
    wv = jax.random.uniform(kwv, (H, hs, hs), jnp.float32, -bound, bound)
    bq = jax.random.uniform(kbq, (H, hs), jnp.float32, -bound, bound)
    bk = jax.random.uniform(kbk, (H, hs), jnp.float32, -bound, bound)
    bv = jax.random.uniform(kbv, (H, hs), jnp.float32, -bound, bound)

    ref = _reference(x, wq, wk, wv, bq, bk, bv, D=D, H=H)

    # f32 MXU operands (exact path; approx reciprocal only source of drift)
    out_f32 = attention_block(x, wq, wk, wv, bq, bk, bv, D=D, H=H,
                              mxu_dtype=jnp.float32)
    out_f32 = jax.block_until_ready(out_f32)
    assert out_f32.shape == (B, S, D)
    assert jnp.allclose(out_f32, ref, atol=2e-3, rtol=2e-3), "f32 mismatch"

    # bf16 MXU operands (v6e/v7x fast path; f32 softmax/accumulation)
    out_bf16 = attention_block(x, wq, wk, wv, bq, bk, bv, D=D, H=H,
                               mxu_dtype=jnp.bfloat16)
    out_bf16 = jax.block_until_ready(out_bf16)
    assert out_bf16.shape == (B, S, D)
    assert jnp.allclose(out_bf16, ref, atol=5e-2, rtol=5e-2), "bf16 mismatch"

    print("KERNEL_OK")
</pallas_src>

<mosaic_0001>
module attributes {stable_mosaic.version = 11 : i64} {
  func.func @_attn_kernel(%arg0: i32, %arg1: memref<1x2x8x16xf32, #tpu.memory_space<vmem>>, %arg2: memref<2x16x48xf32, #tpu.memory_space<vmem>>, %arg3: memref<2x1x48xf32, #tpu.memory_space<vmem>>, %arg4: memref<1x8x32xf32, #tpu.memory_space<vmem>>) attributes {dimension_semantics = [#tpu.dimension_semantics<parallel>], iteration_bounds = array<i64: 2>, scalar_prefetch = 0 : i64, scratch_operands = 0 : i64, tpu.core_type = #tpu.core_type<tc>, window_params = [{transform_indices = @transform_0, window_bounds = array<i64: 1, 2, 8, 16>}, {pipeline_mode = #tpu.pipeline_mode<synchronous>, transform_indices = @transform_1, window_bounds = array<i64: 2, 16, 48>}, {pipeline_mode = #tpu.pipeline_mode<synchronous>, transform_indices = @transform_2, window_bounds = array<i64: 2, 1, 48>}, {transform_indices = @transform_3, window_bounds = array<i64: 1, 8, 32>}]} {
    %c0 = arith.constant 0 : index
    %c0_0 = arith.constant 0 : index
    %c0_1 = arith.constant 0 : index
    %c0_2 = arith.constant 0 : index
    %0 = vector.load %arg1[%c0, %c0_0, %c0_1, %c0_2] : memref<1x2x8x16xf32, #tpu.memory_space<vmem>>, vector<1x1x8x16xf32>
    %1 = vector.shape_cast %0 : vector<1x1x8x16xf32> to vector<8x16xf32>
    %c0_3 = arith.constant 0 : index
    %c0_4 = arith.constant 0 : index
    %c0_5 = arith.constant 0 : index
    %2 = vector.load %arg2[%c0_3, %c0_4, %c0_5] : memref<2x16x48xf32, #tpu.memory_space<vmem>>, vector<1x16x48xf32>
    %3 = vector.shape_cast %2 : vector<1x16x48xf32> to vector<16x48xf32>
    %c0_6 = arith.constant 0 : index
    %c0_7 = arith.constant 0 : index
    %c0_8 = arith.constant 0 : index
    %4 = vector.load %arg3[%c0_6, %c0_7, %c0_8] : memref<2x1x48xf32, #tpu.memory_space<vmem>>, vector<1x1x48xf32>
    %5 = vector.shape_cast %4 : vector<1x1x48xf32> to vector<1x48xf32>
    %cst = arith.constant dense<0.000000e+00> : vector<8x48xf32>
    %6 = tpu.matmul %1, %3, %cst {dimension_numbers = #tpu.dot_dimension_numbers<[1], [0], [0], [1], [0, 0, 1, 1], [], []>} : vector<8x16xf32>, vector<16x48xf32>, vector<8x48xf32> -> vector<8x48xf32>
    %7 = vector.broadcast %5 : vector<1x48xf32> to vector<8x48xf32>
    %8 = arith.addf %6, %7 : vector<8x48xf32>
    %9 = vector.extract_strided_slice %8 {offsets = [0, 0], sizes = [8, 16], strides = [1, 1]} : vector<8x48xf32> to vector<8x16xf32>
    %cst_9 = arith.constant 2.500000e-01 : f32
    %10 = vector.broadcast %cst_9 : f32 to vector<8x16xf32>
    %11 = arith.mulf %9, %10 : vector<8x16xf32>
    %12 = vector.extract_strided_slice %8 {offsets = [0, 16], sizes = [8, 16], strides = [1, 1]} : vector<8x48xf32> to vector<8x16xf32>
    %13 = vector.extract_strided_slice %8 {offsets = [0, 32], sizes = [8, 16], strides = [1, 1]} : vector<8x48xf32> to vector<8x16xf32>
    %cst_10 = arith.constant dense<0.000000e+00> : vector<8x8xf32>
    %14 = tpu.matmul %11, %12, %cst_10 {dimension_numbers = #tpu.dot_dimension_numbers<[1], [1], [0], [0], [0, 0, 1, 0], [], []>} : vector<8x16xf32>, vector<8x16xf32>, vector<8x8xf32> -> vector<8x8xf32>
    %cst_11 = arith.constant dense<0xFF800000> : vector<8xf32>
    %15 = vector.multi_reduction <maximumf>, %14, %cst_11 [1] : vector<8x8xf32> to vector<8xf32>
    %16 = vector.shape_cast %15 : vector<8xf32> to vector<8x1xf32>
    %17 = vector.broadcast %16 : vector<8x1xf32> to vector<8x8xf32>
    %18 = arith.subf %14, %17 : vector<8x8xf32>
    %19 = math.exp %18 : vector<8x8xf32>
    %cst_12 = arith.constant dense<0.000000e+00> : vector<8xf32>
    %20 = vector.multi_reduction <add>, %19, %cst_12 [1] : vector<8x8xf32> to vector<8xf32>
    %21 = vector.shape_cast %20 : vector<8xf32> to vector<8x1xf32>
    %22 = tpu.reciprocal %21 {approx = true} : vector<8x1xf32> -> vector<8x1xf32>
    %23 = vector.broadcast %22 : vector<8x1xf32> to vector<8x8xf32>
    %24 = arith.mulf %19, %23 : vector<8x8xf32>
    %cst_13 = arith.constant dense<0.000000e+00> : vector<8x16xf32>
    %25 = tpu.matmul %24, %13, %cst_13 {dimension_numbers = #tpu.dot_dimension_numbers<[1], [0], [0], [1], [0, 0, 1, 1], [], []>} : vector<8x8xf32>, vector<8x16xf32>, vector<8x16xf32> -> vector<8x16xf32>
    %c0_14 = arith.constant 0 : index
    %c1 = arith.constant 1 : index
    %c0_15 = arith.constant 0 : index
    %c0_16 = arith.constant 0 : index
    %26 = vector.load %arg1[%c0_14, %c1, %c0_15, %c0_16] : memref<1x2x8x16xf32, #tpu.memory_space<vmem>>, vector<1x1x8x16xf32>
    %27 = vector.shape_cast %26 : vector<1x1x8x16xf32> to vector<8x16xf32>
    %c1_17 = arith.constant 1 : index
    %c0_18 = arith.constant 0 : index
    %c0_19 = arith.constant 0 : index
    %28 = vector.load %arg2[%c1_17, %c0_18, %c0_19] : memref<2x16x48xf32, #tpu.memory_space<vmem>>, vector<1x16x48xf32>
    %29 = vector.shape_cast %28 : vector<1x16x48xf32> to vector<16x48xf32>
    %c1_20 = arith.constant 1 : index
    %c0_21 = arith.constant 0 : index
    %c0_22 = arith.constant 0 : index
    %30 = vector.load %arg3[%c1_20, %c0_21, %c0_22] : memref<2x1x48xf32, #tpu.memory_space<vmem>>, vector<1x1x48xf32>
    %31 = vector.shape_cast %30 : vector<1x1x48xf32> to vector<1x48xf32>
    %cst_23 = arith.constant dense<0.000000e+00> : vector<8x48xf32>
    %32 = tpu.matmul %27, %29, %cst_23 {dimension_numbers = #tpu.dot_dimension_numbers<[1], [0], [0], [1], [0, 0, 1, 1], [], []>} : vector<8x16xf32>, vector<16x48xf32>, vector<8x48xf32> -> vector<8x48xf32>
    %33 = vector.broadcast %31 : vector<1x48xf32> to vector<8x48xf32>
    %34 = arith.addf %32, %33 : vector<8x48xf32>
    %35 = vector.extract_strided_slice %34 {offsets = [0, 0], sizes = [8, 16], strides = [1, 1]} : vector<8x48xf32> to vector<8x16xf32>
    %cst_24 = arith.constant 2.500000e-01 : f32
    %36 = vector.broadcast %cst_24 : f32 to vector<8x16xf32>
    %37 = arith.mulf %35, %36 : vector<8x16xf32>
    %38 = vector.extract_strided_slice %34 {offsets = [0, 16], sizes = [8, 16], strides = [1, 1]} : vector<8x48xf32> to vector<8x16xf32>
    %39 = vector.extract_strided_slice %34 {offsets = [0, 32], sizes = [8, 16], strides = [1, 1]} : vector<8x48xf32> to vector<8x16xf32>
    %cst_25 = arith.constant dense<0.000000e+00> : vector<8x8xf32>
    %40 = tpu.matmul %37, %38, %cst_25 {dimension_numbers = #tpu.dot_dimension_numbers<[1], [1], [0], [0], [0, 0, 1, 0], [], []>} : vector<8x16xf32>, vector<8x16xf32>, vector<8x8xf32> -> vector<8x8xf32>
    %cst_26 = arith.constant dense<0xFF800000> : vector<8xf32>
    %41 = vector.multi_reduction <maximumf>, %40, %cst_26 [1] : vector<8x8xf32> to vector<8xf32>
    %42 = vector.shape_cast %41 : vector<8xf32> to vector<8x1xf32>
    %43 = vector.broadcast %42 : vector<8x1xf32> to vector<8x8xf32>
    %44 = arith.subf %40, %43 : vector<8x8xf32>
    %45 = math.exp %44 : vector<8x8xf32>
    %cst_27 = arith.constant dense<0.000000e+00> : vector<8xf32>
    %46 = vector.multi_reduction <add>, %45, %cst_27 [1] : vector<8x8xf32> to vector<8xf32>
    %47 = vector.shape_cast %46 : vector<8xf32> to vector<8x1xf32>
    %48 = tpu.reciprocal %47 {approx = true} : vector<8x1xf32> -> vector<8x1xf32>
    %49 = vector.broadcast %48 : vector<8x1xf32> to vector<8x8xf32>
    %50 = arith.mulf %45, %49 : vector<8x8xf32>
    %cst_28 = arith.constant dense<0.000000e+00> : vector<8x16xf32>
    %51 = tpu.matmul %50, %39, %cst_28 {dimension_numbers = #tpu.dot_dimension_numbers<[1], [0], [0], [1], [0, 0, 1, 1], [], []>} : vector<8x8xf32>, vector<8x16xf32>, vector<8x16xf32> -> vector<8x16xf32>
    %52 = tpu.concatenate %25, %51 in 1 : vector<8x16xf32>, vector<8x16xf32> -> vector<8x32xf32>
    %c0_29 = arith.constant 0 : index
    %c0_30 = arith.constant 0 : index
    %c0_31 = arith.constant 0 : index
    %53 = vector.load %arg4[%c0_29, %c0_30, %c0_31] : memref<1x8x32xf32, #tpu.memory_space<vmem>>, vector<1x8x32xf32>
    %54 = vector.shape_cast %53 : vector<1x8x32xf32> to vector<8x32xf32>
    %55 = vector.shape_cast %52 : vector<8x32xf32> to vector<1x8x32xf32>
    tpu.vector_store %arg4[%c0_29, %c0_30, %c0_31], %55 {strides = array<i32>} : memref<1x8x32xf32, #tpu.memory_space<vmem>>, vector<1x8x32xf32>,
    return
  }
  func.func @transform_0(%arg0: i32) -> (i32, i32, i32, i32) {
    %c0_i32 = arith.constant 0 : i32
    %c0_i32_0 = arith.constant 0 : i32
    %c0_i32_1 = arith.constant 0 : i32
    %c0_i32_2 = arith.constant 0 : i32
    return %arg0, %c0_i32, %c0_i32_0, %c0_i32_1 : i32, i32, i32, i32
  }
  func.func @transform_1(%arg0: i32) -> (i32, i32, i32) {
    %c0_i32 = arith.constant 0 : i32
    %c0_i32_0 = arith.constant 0 : i32
    %c0_i32_1 = arith.constant 0 : i32
    %c0_i32_2 = arith.constant 0 : i32
    return %c0_i32, %c0_i32_0, %c0_i32_1 : i32, i32, i32
  }
  func.func @transform_2(%arg0: i32) -> (i32, i32, i32) {
    %c0_i32 = arith.constant 0 : i32
    %c0_i32_0 = arith.constant 0 : i32
    %c0_i32_1 = arith.constant 0 : i32
    %c0_i32_2 = arith.constant 0 : i32
    return %c0_i32, %c0_i32_0, %c0_i32_1 : i32, i32, i32
  }
  func.func @transform_3(%arg0: i32) -> (i32, i32, i32) {
    %c0_i32 = arith.constant 0 : i32
    %c0_i32_0 = arith.constant 0 : i32
    %c0_i32_1 = arith.constant 0 : i32
    return %arg0, %c0_i32, %c0_i32_0 : i32, i32, i32
  }
}

</mosaic_0001>

<llo_original>
// kernel: tpu_custom_call.1
$region0: #{tpu_custom_call.1}
  #allocation0 [shape = 'u32[]', space=smem, size = 0x4, offset = 0x4, fixed_abs, tag = 'smem constant byte address 0x4 - core index']
  #allocation1 [shape = 'u32[144,128]{1,0:T(1,128)}', space=vmem, size = 0x12000, scoped, tag = 'internal scratch']
  %s0 = inlined_call_operand.hbm [shape: f32[2,2,8,16], index: 0, kind: input, shape index: {}]
  %s1 = inlined_call_operand.hbm [shape: f32[2,16,48], index: 1, kind: input, shape index: {}]
  %s2 = inlined_call_operand.vmem [shape: f32[2,1,48], index: 2, kind: input, shape index: {}]
  %s3 = inlined_call_operand.hbm [shape: f32[2,8,32], index: 3, kind: output, shape index: {}]
  %s4 = sld [smem:[#allocation0]]
  $region53: #{tpu_custom_call.1} parent=0
    _
  %s6 = ssub.s32 1, %s4
  %s7 = scalar_select 0, %s6, %s4
  $region1: #{tpu_custom_call.1} parent=0
    #allocation2 [shape = 'u8[16384]{0}', space=vmem, size = 0x4000, scoped, tag = 'input window, operand 0']
    #allocation3 [shape = 's32[2]{0}', space=sflag, size = 0x8, scoped, tag = 'scoped memory for tpu_custom_call.1']
    #allocation4 [shape = 's32[2]{0}', space=sflag, size = 0x8, scoped, tag = 'scoped memory for tpu_custom_call.1']
    #allocation5 [shape = 'u8[16384]{0}', space=vmem, size = 0x4000, scoped, tag = 'input window, operand 1, single buffered']
    #allocation6 [shape = 's32[1]{0}', space=sflag, size = 0x4, scoped, tag = 'scoped memory for tpu_custom_call.1']
    #allocation7 [shape = 'u8[8192]{0}', space=vmem, size = 0x2000, scoped, tag = 'output window, operand 0']
    %8 = vsyncpa [#allocation3], 0
    %s9 = scalar_lea.sflag [#allocation3], 1
    %10 = vsyncpa %s9, 0
    %11 = vsyncpa [#allocation6], 0
    %12 = vsyncpa [#allocation4], 0
    %s13 = scalar_lea.sflag [#allocation4], 1
    %14 = vsyncpa %s13, 0
    loop: start=0, step=1, limit=4
    $region2: #{tpu_custom_call.1} parent=1 // loop_pre_header
      _
    $region3: #{tpu_custom_call.1} parent=1 // loop_header
      %s16 = sphi 0, %s20
      %p17 = scmp.ge.s32.totalorder %s16, 4
      %s26 = sphi 0, %s28
      %s29 = sphi 0, %s26
      %s30 = sphi 0, %s29
      %s46 = sphi 0, %s30
      %s50 = sphi 0, %s50
      %s52 = sphi 0, %s50
      %s53 = sphi 0, %s52
      %s67 = sphi 0, %s53
      %s71 = sphi 0, %s71
      %s73 = sphi 0, %s71
      %s74 = sphi 0, %s73
      %s88 = sphi 0, %s74
      %s94 = sphi 0, %s96
      %s97 = sphi 0, %s94
      %s98 = sphi 0, %s97
      %s114 = sphi 0, %s98
    $region4: #{tpu_custom_call.1} parent=1 // loop_header_branch
      %19 = sbr.rel (%p17) target = $region8
    $region5: #{tpu_custom_call.1} parent=1 // loop_body
      %s21 = ssub.s32 %s16, 1
      %s22 = ssub.s32 %s16, 2
      %s23 = sadd.s32 %s16, 1
      %s24 = ssub.s32 %s16, %s23
      %p25 = scmp.eq.s32.totalorder %s24, 0
      %s27 = sadd.s32 %s26, 1
      %s28 = scalar_select %p25, %s26, %s27
      %p31 = pneg %p25
      %p32 = scmp.eq.s32.totalorder %s16, 1
      %p33 = por %p31, %p32
      %p34 = scmp.ne.s32.totalorder %s26, %s29
      %p35 = scmp.eq.s32.totalorder %s16, 0
      %p36 = por %p34, %p35
      %p37 = scmp.ne.s32.totalorder %s26, %s29
      %p38 = scmp.eq.s32.totalorder %s21, 1
      %p39 = por %p37, %p38
      %p40 = scmp.ne.s32.totalorder %s29, %s30
      %p41 = scmp.eq.s32.totalorder %s21, 0
      %p42 = por %p40, %p41
      %p43 = scmp.ne.s32.totalorder %s29, %s30
      %p44 = scmp.eq.s32.totalorder %s22, 1
      %p45 = por %p43, %p44
      %p47 = scmp.ne.s32.totalorder %s30, %s46
      %p48 = scmp.eq.s32.totalorder %s22, 0
      %p49 = por %p47, %p48
      %s51 = sadd.s32 %s50, 1
      %p54 = scmp.eq.s32.totalorder %s16, 1
      %p55 = scmp.ne.s32.totalorder %s50, %s52
      %p56 = scmp.eq.s32.totalorder %s16, 0
      %p57 = por %p55, %p56
      %p58 = scmp.ne.s32.totalorder %s50, %s52
      %p59 = scmp.eq.s32.totalorder %s21, 1
      %p60 = por %p58, %p59
      %p61 = scmp.ne.s32.totalorder %s52, %s53
      %p62 = scmp.eq.s32.totalorder %s21, 0
      %p63 = por %p61, %p62
      %p64 = scmp.ne.s32.totalorder %s52, %s53
      %p65 = scmp.eq.s32.totalorder %s22, 1
      %p66 = por %p64, %p65
      %p68 = scmp.ne.s32.totalorder %s53, %s67
      %p69 = scmp.eq.s32.totalorder %s22, 0
      %p70 = por %p68, %p69
      %s72 = sadd.s32 %s71, 1
      %p75 = scmp.eq.s32.totalorder %s16, 1
      %p76 = scmp.ne.s32.totalorder %s71, %s73
      %p77 = scmp.eq.s32.totalorder %s16, 0
      %p78 = por %p76, %p77
      %p79 = scmp.ne.s32.totalorder %s71, %s73
      %p80 = scmp.eq.s32.totalorder %s21, 1
      %p81 = por %p79, %p80
      %p82 = scmp.ne.s32.totalorder %s73, %s74
      %p83 = scmp.eq.s32.totalorder %s21, 0
      %p84 = por %p82, %p83
      %p85 = scmp.ne.s32.totalorder %s73, %s74
      %p86 = scmp.eq.s32.totalorder %s22, 1
      %p87 = por %p85, %p86
      %p89 = scmp.ne.s32.totalorder %s74, %s88
      %p90 = scmp.eq.s32.totalorder %s22, 0
      %p91 = por %p89, %p90
      %s92 = ssub.s32 %s16, %s23
      %p93 = scmp.eq.s32.totalorder %s92, 0
      %s95 = sadd.s32 %s94, 1
      %s96 = scalar_select %p93, %s94, %s95
      %p99 = pneg %p93
      %p100 = scmp.eq.s32.totalorder %s16, 1
      %p101 = por %p99, %p100
      %p102 = scmp.ne.s32.totalorder %s94, %s97
      %p103 = scmp.eq.s32.totalorder %s16, 0
      %p104 = por %p102, %p103
      %p105 = scmp.ne.s32.totalorder %s94, %s97
      %p106 = scmp.eq.s32.totalorder %s21, 1
      %p107 = por %p105, %p106
      %p108 = scmp.ne.s32.totalorder %s97, %s98
      %p109 = scmp.eq.s32.totalorder %s21, 0
      %p110 = por %p108, %p109
      %p111 = scmp.ne.s32.totalorder %s97, %s98
      %p112 = scmp.eq.s32.totalorder %s22, 1
      %p113 = por %p111, %p112
      %p115 = scmp.ne.s32.totalorder %s98, %s114
      %p116 = scmp.eq.s32.totalorder %s22, 0
      %p117 = por %p115, %p116
      %p118 = scmp.le.s32.totalorder 1, %s16
      %p119 = scmp.lt.s32.totalorder %s16, 3
      %p120 = pnand %p118, %p119
      %p121 = pneg %p120
      // Predicated region
      $region9: #{tpu_custom_call.1} parent=5 // pred_check
        _
      $region10: #{tpu_custom_call.1} parent=5 // pred_check_branch
        %123 = sbr.rel (%p120) target = $region12
      $region11: #{tpu_custom_call.1} parent=5 // pred_region
        %s124 = ssub.s32 %s16, 1
        // Predicated region
        $region13: #{tpu_custom_call.1} parent=11 // pred_check
          %p125 = pneg %p63
        $region14: #{tpu_custom_call.1} parent=11 // pred_check_branch
          %127 = sbr.rel (%p125) target = $region16
        $region15: #{tpu_custom_call.1} parent=11 // pred_region
          %s129 = ssub.s32 512, 512
          %130 = vsyncadd [#allocation6], %s129
          %s131 = sshll.u32 [#allocation5], 4
          %s132 = int_to_ptr.vmem [resolvable:$true] %s131
          %137 = dma.hbm_to_vmem [thread:$0]  %s1, 512, %s132, [#allocation6], 128, 128, 8
        $region16: #{tpu_custom_call.1} parent=11 // pred_fallthru
          _
        // Predicated region
        $region17: #{tpu_custom_call.1} parent=11 // pred_check
          %p138 = pneg %p84
        $region18: #{tpu_custom_call.1} parent=11 // pred_check_branch
          %140 = sbr.rel (%p138) target = $region20
        $region19: #{tpu_custom_call.1} parent=11 // pred_region
          _
        $region20: #{tpu_custom_call.1} parent=11 // pred_fallthru
          _
      $region12: #{tpu_custom_call.1} parent=5 // pred_fallthru
        _
      %p141 = scmp.lt.s32.totalorder %s16, 2
      // Predicated region
      $region21: #{tpu_custom_call.1} parent=5 // pred_check
        %p142 = pneg %p141
      $region22: #{tpu_custom_call.1} parent=5 // pred_check_branch
        %144 = sbr.rel (%p142) target = $region24
      $region23: #{tpu_custom_call.1} parent=5 // pred_region
        // Predicated region
        $region25: #{tpu_custom_call.1} parent=23 // pred_check
          %p145 = pneg %p36
        $region26: #{tpu_custom_call.1} parent=23 // pred_check_branch
          %147 = sbr.rel (%p145) target = $region28
        $region27: #{tpu_custom_call.1} parent=23 // pred_region
          %s148 = sand.u32 %s26, 1
          %s149 = scalar_lea.sflag [#allocation3], %s148
          %s150 = sand.u32 %s26, 1
          %s151 = smul.addr %s150, 16
          %s152 = scalar_lea.vmem [#allocation2], %s151
          %s154 = ssub.s32 256, 256
          %155 = vsyncadd %s149, %s154
          %s156 = smul.addr %s16, 2
          %s157 = smul.addr %s156, 128
          %s158 = scalar_lea.hbm %s0, %s157
          %s159 = sshll.u32 %s152, 4
          %s160 = int_to_ptr.vmem [resolvable:$true] %s159
          %165 = dma.hbm_to_vmem [thread:$0]  %s158, 256, %s160, %s149, 128, 128, 8
        $region28: #{tpu_custom_call.1} parent=23 // pred_fallthru
          _
      $region24: #{tpu_custom_call.1} parent=5 // pred_fallthru
        _
      %p166 = scmp.le.s32.totalorder 1, %s16
      %p167 = scmp.lt.s32.totalorder %s16, 3
      %p168 = pnand %p166, %p167
      %p169 = pneg %p168
      // Predicated region
      $region29: #{tpu_custom_call.1} parent=5 // pred_check
        _
      $region30: #{tpu_custom_call.1} parent=5 // pred_check_branch
        %171 = sbr.rel (%p168) target = $region32
      $region31: #{tpu_custom_call.1} parent=5 // pred_region
        %s172 = ssub.s32 %s16, 1
        %s173 = sand.u32 %s29, 1
        %s174 = scalar_lea.sflag [#allocation3], %s173
        %s175 = sand.u32 %s29, 1
        %s176 = smul.addr %s175, 16
        %s177 = scalar_lea.vmem [#allocation2], %s176
        // Predicated region
        $region33: #{tpu_custom_call.1} parent=31 // pred_check
          %p178 = pneg %p42
        $region34: #{tpu_custom_call.1} parent=31 // pred_check_branch
          %180 = sbr.rel (%p178) target = $region36
        $region35: #{tpu_custom_call.1} parent=31 // pred_region
          %181 = dma.done %s174, 256
        $region36: #{tpu_custom_call.1} parent=31 // pred_fallthru
          _
        // Predicated region
        $region37: #{tpu_custom_call.1} parent=31 // pred_check
          %p182 = pneg %p63
        $region38: #{tpu_custom_call.1} parent=31 // pred_check_branch
          %184 = sbr.rel (%p182) target = $region40
        $region39: #{tpu_custom_call.1} parent=31 // pred_region
          %185 = dma.done [#allocation6], 512
        $region40: #{tpu_custom_call.1} parent=31 // pred_fallthru
          _
        %s186 = sand.u32 %s29, 1
        %s187 = scalar_lea.sflag [#allocation3], %s186
        %s188 = sand.u32 %s29, 1
        %s189 = smul.addr %s188, 16
        %s190 = scalar_lea.vmem [#allocation2], %s189
        %p191 = pneg %p42
        %p192 = pneg %p39
        %p193 = pneg %p63
        %p194 = pneg %p60
        %p195 = pneg %p84
        %p196 = pneg %p81
        %p197 = pneg %p110
        %p198 = pneg %p107
        %s199 = sand.u32 %s97, 1
        %s200 = scalar_lea.sflag [#allocation4], %s199
        %s201 = sand.u32 %s97, 1
        %s202 = smul.addr %s201, 8
        %s203 = scalar_lea.vmem [#allocation7], %s202
        %v204 = vld [vmem:[%s177] sm:$0xff]
        %v205 = vld [vmem:[#allocation5] sm:$0xff]
        %v206 = vld [vmem:[#allocation5 + $0x8] sm:$0xff]
        %v207 = vld [vmem:[%s2] sm:$0x1]
        %v209 = vlaneseq
        %v210 = vshrl.u32 %v209, 7
        %v211 = vsub.s32 0, %v210
        %v212 = vrot.slane %v207, %v211
        %vm214 = vcmask 130048
        %v216 = vsel %vm214, %v204, 0
        %218 = vmatprep.subr.mxu0 0.0
        %219 = vmatpush1.msra.mxu0 0.0
        %220 = vmatprep.subr.mxu0 0.0
        %221 = vmatpush1.msra.mxu0 0.0
        %222 = vmatprep.subr.mxu0 0.0
        %223 = vmatpush1.msra.mxu0 0.0
        %224 = vmatprep.subr.mxu0 0.0
        %225 = vmatpush1.msra.mxu0 0.0
        %226 = vmatprep.subr.mxu0 0.0
        %227 = vmatpush1.msra.mxu0 0.0
        %228 = vmatprep.subr.mxu0 0.0
        %229 = vmatpush1.msra.mxu0 0.0
        %230 = vmatprep.subr.mxu0 0.0
        %231 = vmatpush1.msra.mxu0 0.0
        %232 = vmatprep.subr.mxu0 0.0
        %233 = vmatpush1.msra.mxu0 0.0
        %234 = vmatprep.subr.mxu0 0.0
        %235 = vmatpush1.msra.mxu0 0.0
        %236 = vmatprep.subr.mxu0 0.0
        %237 = vmatpush1.msra.mxu0 0.0
        %238 = vmatprep.subr.mxu0 0.0
        %239 = vmatpush1.msra.mxu0 0.0
        %240 = vmatprep.subr.mxu0 0.0
        %241 = vmatpush1.msra.mxu0 0.0
        %242 = vmatprep.subr.mxu0 0.0
        %243 = vmatpush1.msra.mxu0 0.0
        %244 = vmatprep.subr.mxu0 0.0
        %245 = vmatpush1.msra.mxu0 0.0
        %246 = vmatprep.subr.mxu0 0.0
        %247 = vmatpush1.msra.mxu0 %v206
        %248 = vmatprep.subr.mxu0 0.0
        %249 = vmatpush1.msra.mxu0 %v205
        %250 = vmatprep.subr.mxu0 0.0
        %251 = vmatpush2.msra.mxu0 0.0
        %252 = vmatprep.subr.mxu0 0.0
        %253 = vmatpush2.msra.mxu0 0.0
        %254 = vmatprep.subr.mxu0 0.0
        %255 = vmatpush2.msra.mxu0 0.0
        %256 = vmatprep.subr.mxu0 0.0
        %257 = vmatpush2.msra.mxu0 0.0
        %258 = vmatprep.subr.mxu0 0.0
        %259 = vmatpush2.msra.mxu0 0.0
        %260 = vmatprep.subr.mxu0 0.0
        %261 = vmatpush2.msra.mxu0 0.0
        %262 = vmatprep.subr.mxu0 0.0
        %263 = vmatpush2.msra.mxu0 0.0
        %264 = vmatprep.subr.mxu0 0.0
        %265 = vmatpush2.msra.mxu0 0.0
        %266 = vmatprep.subr.mxu0 0.0
        %267 = vmatpush2.msra.mxu0 0.0
        %268 = vmatprep.subr.mxu0 0.0
        %269 = vmatpush2.msra.mxu0 0.0
        %270 = vmatprep.subr.mxu0 0.0
        %271 = vmatpush2.msra.mxu0 0.0
        %272 = vmatprep.subr.mxu0 0.0
        %273 = vmatpush2.msra.mxu0 0.0
        %274 = vmatprep.subr.mxu0 0.0
        %275 = vmatpush2.msra.mxu0 0.0
        %276 = vmatprep.subr.mxu0 0.0
        %277 = vmatpush2.msra.mxu0 0.0
        %278 = vmatprep.subr.mxu0 0.0
        %279 = vmatpush2.msra.mxu0 0.0
        %280 = vmatprep.subr.mxu0 0.0
        %281 = vmatpush2.msra.mxu0 0.0
        %282 = vmatprep.mubr.f32.mxu0 0.0
        %283 = vmatmul.mubr.f32.gmra.mxu0 %v216
        %v284 = vpop.f32.mrf.mxu0
        %v285 = vadd.f32 %v212, %v284
        %v286 = vpop.f32.mrf.mxu0
        %287 = vdwg.mxu0
        %v288 = vmul.f32 %v285, 0.25
        %290 = vrot.lane.b32.xlu0 %v285, 112
        %v291 = vpop.permute.xlu0 %290
        %v293 = vsel %vm214, %v288, 0
        %v295 = vsel %vm214, %v291, 0
        %297 = vmatprep.subr.mxu0 0.0
        %298 = vmatpush1.xpose.msra.mxu0 0.0
        %299 = vmatprep.subr.mxu0 0.0
        %300 = vmatpush1.xpose.msra.mxu0 0.0
        %301 = vmatprep.subr.mxu0 0.0
        %302 = vmatpush1.xpose.msra.mxu0 0.0
        %303 = vmatprep.subr.mxu0 0.0
        %304 = vmatpush1.xpose.msra.mxu0 0.0
        %305 = vmatprep.subr.mxu0 0.0
        %306 = vmatpush1.xpose.msra.mxu0 0.0
        %307 = vmatprep.subr.mxu0 0.0
        %308 = vmatpush1.xpose.msra.mxu0 0.0
        %309 = vmatprep.subr.mxu0 0.0
        %310 = vmatpush1.xpose.msra.mxu0 0.0
        %311 = vmatprep.subr.mxu0 0.0
        %312 = vmatpush1.xpose.msra.mxu0 0.0
        %313 = vmatprep.subr.mxu0 0.0
        %314 = vmatpush1.xpose.msra.mxu0 0.0
        %315 = vmatprep.subr.mxu0 0.0
        %316 = vmatpush1.xpose.msra.mxu0 0.0
        %317 = vmatprep.subr.mxu0 0.0
        %318 = vmatpush1.xpose.msra.mxu0 0.0
        %319 = vmatprep.subr.mxu0 0.0
        %320 = vmatpush1.xpose.msra.mxu0 0.0
        %321 = vmatprep.subr.mxu0 0.0
        %322 = vmatpush1.xpose.msra.mxu0 0.0
        %323 = vmatprep.subr.mxu0 0.0
        %324 = vmatpush1.xpose.msra.mxu0 0.0
        %325 = vmatprep.subr.mxu0 0.0
        %326 = vmatpush1.xpose.msra.mxu0 0.0
        %327 = vmatprep.subr.mxu0 0.0
        %328 = vmatpush1.xpose.msra.mxu0 %v295
        %329 = vmatprep.subr.mxu0 0.0
        %330 = vmatpush2.xpose.msra.mxu0 0.0
        %331 = vmatprep.subr.mxu0 0.0
        %332 = vmatpush2.xpose.msra.mxu0 0.0
        %333 = vmatprep.subr.mxu0 0.0
        %334 = vmatpush2.xpose.msra.mxu0 0.0
        %335 = vmatprep.subr.mxu0 0.0
        %336 = vmatpush2.xpose.msra.mxu0 0.0
        %337 = vmatprep.subr.mxu0 0.0
        %338 = vmatpush2.xpose.msra.mxu0 0.0
        %339 = vmatprep.subr.mxu0 0.0
        %340 = vmatpush2.xpose.msra.mxu0 0.0
        %341 = vmatprep.subr.mxu0 0.0
        %342 = vmatpush2.xpose.msra.mxu0 0.0
        %343 = vmatprep.subr.mxu0 0.0
        %344 = vmatpush2.xpose.msra.mxu0 0.0
        %345 = vmatprep.subr.mxu0 0.0
        %346 = vmatpush2.xpose.msra.mxu0 0.0
        %347 = vmatprep.subr.mxu0 0.0
        %348 = vmatpush2.xpose.msra.mxu0 0.0
        %349 = vmatprep.subr.mxu0 0.0
        %350 = vmatpush2.xpose.msra.mxu0 0.0
        %351 = vmatprep.subr.mxu0 0.0
        %352 = vmatpush2.xpose.msra.mxu0 0.0
        %353 = vmatprep.subr.mxu0 0.0
        %354 = vmatpush2.xpose.msra.mxu0 0.0
        %355 = vmatprep.subr.mxu0 0.0
        %356 = vmatpush2.xpose.msra.mxu0 0.0
        %357 = vmatprep.subr.mxu0 0.0
        %358 = vmatpush2.xpose.msra.mxu0 0.0
        %359 = vmatprep.subr.mxu0 0.0
        %360 = vmatpush2.xpose.msra.mxu0 0.0
        %361 = vmatprep.mubr.f32.mxu0 0.0
        %362 = vmatmul.mubr.f32.gmra.mxu0 %v293
        %v363 = vpop.f32.mrf.mxu0
        %v364 = vadd.f32 0.0, %v363
        %v365 = vpop.f32.mrf.mxu0
        %366 = vdwg.mxu0
        %vm367 = vcmask 64512
        %v368 = vsel %vm367, %v364, -inf
        %369 = vmax.xlane.f32.xlu0 %v368
        %v370 = vpop.xlane.xlu0 %369
        %v371 = vsub.f32 %v364, %v370
        %v372 = vmul.f32 %v371, 1.442695
        %v373 = vpow.pop %v372
        %v374 = vsel %vm367, %v373, 0.0
        %375 = vadd.xlane.f32.xlu0 %v374
        %v376 = vpop.xlane.xlu0 %375
        %v377 = vrcp.pop %v376
        %v378 = vmul.f32 %v373, %v377
        %379 = vrot.lane.b32.xlu0 %v285, 96
        %v380 = vpop.permute.xlu0 %379
        %v383 = vsel %vm367, %v378, 0
        %385 = vmatprep.subr.mxu0 0.0
        %386 = vmatpush1.msra.mxu0 0.0
        %387 = vmatprep.subr.mxu0 0.0
        %388 = vmatpush1.msra.mxu0 0.0
        %389 = vmatprep.subr.mxu0 0.0
        %390 = vmatpush1.msra.mxu0 0.0
        %391 = vmatprep.subr.mxu0 0.0
        %392 = vmatpush1.msra.mxu0 0.0
        %393 = vmatprep.subr.mxu0 0.0
        %394 = vmatpush1.msra.mxu0 0.0
        %395 = vmatprep.subr.mxu0 0.0
        %396 = vmatpush1.msra.mxu0 0.0
        %397 = vmatprep.subr.mxu0 0.0
        %398 = vmatpush1.msra.mxu0 0.0
        %399 = vmatprep.subr.mxu0 0.0
        %400 = vmatpush1.msra.mxu0 0.0
        %401 = vmatprep.subr.mxu0 0.0
        %402 = vmatpush1.msra.mxu0 0.0
        %403 = vmatprep.subr.mxu0 0.0
        %404 = vmatpush1.msra.mxu0 0.0
        %405 = vmatprep.subr.mxu0 0.0
        %406 = vmatpush1.msra.mxu0 0.0
        %407 = vmatprep.subr.mxu0 0.0
        %408 = vmatpush1.msra.mxu0 0.0
        %409 = vmatprep.subr.mxu0 0.0
        %410 = vmatpush1.msra.mxu0 0.0
        %411 = vmatprep.subr.mxu0 0.0
        %412 = vmatpush1.msra.mxu0 0.0
        %413 = vmatprep.subr.mxu0 0.0
        %414 = vmatpush1.msra.mxu0 0.0
        %415 = vmatprep.subr.mxu0 0.0
        %416 = vmatpush1.msra.mxu0 %v380
        %417 = vmatprep.subr.mxu0 0.0
        %418 = vmatpush2.msra.mxu0 0.0
        %419 = vmatprep.subr.mxu0 0.0
        %420 = vmatpush2.msra.mxu0 0.0
        %421 = vmatprep.subr.mxu0 0.0
        %422 = vmatpush2.msra.mxu0 0.0
        %423 = vmatprep.subr.mxu0 0.0
        %424 = vmatpush2.msra.mxu0 0.0
        %425 = vmatprep.subr.mxu0 0.0
        %426 = vmatpush2.msra.mxu0 0.0
        %427 = vmatprep.subr.mxu0 0.0
        %428 = vmatpush2.msra.mxu0 0.0
        %429 = vmatprep.subr.mxu0 0.0
        %430 = vmatpush2.msra.mxu0 0.0
        %431 = vmatprep.subr.mxu0 0.0
        %432 = vmatpush2.msra.mxu0 0.0
        %433 = vmatprep.subr.mxu0 0.0
        %434 = vmatpush2.msra.mxu0 0.0
        %435 = vmatprep.subr.mxu0 0.0
        %436 = vmatpush2.msra.mxu0 0.0
        %437 = vmatprep.subr.mxu0 0.0
        %438 = vmatpush2.msra.mxu0 0.0
        %439 = vmatprep.subr.mxu0 0.0
        %440 = vmatpush2.msra.mxu0 0.0
        %441 = vmatprep.subr.mxu0 0.0
        %442 = vmatpush2.msra.mxu0 0.0
        %443 = vmatprep.subr.mxu0 0.0
        %444 = vmatpush2.msra.mxu0 0.0
        %445 = vmatprep.subr.mxu0 0.0
        %446 = vmatpush2.msra.mxu0 0.0
        %447 = vmatprep.subr.mxu0 0.0
        %448 = vmatpush2.msra.mxu0 0.0
        %449 = vmatprep.mubr.f32.mxu0 0.0
        %450 = vmatmul.mubr.f32.gmra.mxu0 %v383
        %v451 = vpop.f32.mrf.mxu0
        %v452 = vadd.f32 0.0, %v451
        %v453 = vpop.f32.mrf.mxu0
        %454 = vdwg.mxu0
        %s455 = scalar_lea.vmem %s177, 8 [#allocation2]
        %v456 = vld [vmem:[%s455] sm:$0xff]
        %s457 = scalar_lea.vmem [#allocation5], 16
        %v458 = vld [vmem:[%s457] sm:$0xff]
        %v459 = vld [vmem:[%s457 + $0x8] sm:$0xff]
        %s460 = scalar_lea.vmem %s2, 1
        %v461 = vld [vmem:[%s460] sm:$0x1]
        %v463 = vlaneseq
        %v464 = vshrl.u32 %v463, 7
        %v465 = vsub.s32 0, %v464
        %v466 = vrot.slane %v461, %v465
        %v469 = vsel %vm214, %v456, 0
        %471 = vmatprep.subr.mxu0 0.0
        %472 = vmatpush1.msra.mxu0 0.0
        %473 = vmatprep.subr.mxu0 0.0
        %474 = vmatpush1.msra.mxu0 0.0
        %475 = vmatprep.subr.mxu0 0.0
        %476 = vmatpush1.msra.mxu0 0.0
        %477 = vmatprep.subr.mxu0 0.0
        %478 = vmatpush1.msra.mxu0 0.0
        %479 = vmatprep.subr.mxu0 0.0
        %480 = vmatpush1.msra.mxu0 0.0
        %481 = vmatprep.subr.mxu0 0.0
        %482 = vmatpush1.msra.mxu0 0.0
        %483 = vmatprep.subr.mxu0 0.0
        %484 = vmatpush1.msra.mxu0 0.0
        %485 = vmatprep.subr.mxu0 0.0
        %486 = vmatpush1.msra.mxu0 0.0
        %487 = vmatprep.subr.mxu0 0.0
        %488 = vmatpush1.msra.mxu0 0.0
        %489 = vmatprep.subr.mxu0 0.0
        %490 = vmatpush1.msra.mxu0 0.0
        %491 = vmatprep.subr.mxu0 0.0
        %492 = vmatpush1.msra.mxu0 0.0
        %493 = vmatprep.subr.mxu0 0.0
        %494 = vmatpush1.msra.mxu0 0.0
        %495 = vmatprep.subr.mxu0 0.0
        %496 = vmatpush1.msra.mxu0 0.0
        %497 = vmatprep.subr.mxu0 0.0
        %498 = vmatpush1.msra.mxu0 0.0
        %499 = vmatprep.subr.mxu0 0.0
        %500 = vmatpush1.msra.mxu0 %v459
        %501 = vmatprep.subr.mxu0 0.0
        %502 = vmatpush1.msra.mxu0 %v458
        %503 = vmatprep.subr.mxu0 0.0
        %504 = vmatpush2.msra.mxu0 0.0
        %505 = vmatprep.subr.mxu0 0.0
        %506 = vmatpush2.msra.mxu0 0.0
        %507 = vmatprep.subr.mxu0 0.0
        %508 = vmatpush2.msra.mxu0 0.0
        %509 = vmatprep.subr.mxu0 0.0
        %510 = vmatpush2.msra.mxu0 0.0
        %511 = vmatprep.subr.mxu0 0.0
        %512 = vmatpush2.msra.mxu0 0.0
        %513 = vmatprep.subr.mxu0 0.0
        %514 = vmatpush2.msra.mxu0 0.0
        %515 = vmatprep.subr.mxu0 0.0
        %516 = vmatpush2.msra.mxu0 0.0
        %517 = vmatprep.subr.mxu0 0.0
        %518 = vmatpush2.msra.mxu0 0.0
        %519 = vmatprep.subr.mxu0 0.0
        %520 = vmatpush2.msra.mxu0 0.0
        %521 = vmatprep.subr.mxu0 0.0
        %522 = vmatpush2.msra.mxu0 0.0
        %523 = vmatprep.subr.mxu0 0.0
        %524 = vmatpush2.msra.mxu0 0.0
        %525 = vmatprep.subr.mxu0 0.0
        %526 = vmatpush2.msra.mxu0 0.0
        %527 = vmatprep.subr.mxu0 0.0
        %528 = vmatpush2.msra.mxu0 0.0
        %529 = vmatprep.subr.mxu0 0.0
        %530 = vmatpush2.msra.mxu0 0.0
        %531 = vmatprep.subr.mxu0 0.0
        %532 = vmatpush2.msra.mxu0 0.0
        %533 = vmatprep.subr.mxu0 0.0
        %534 = vmatpush2.msra.mxu0 0.0
        %535 = vmatprep.mubr.f32.mxu0 0.0
        %536 = vmatmul.mubr.f32.gmra.mxu0 %v469
        %v537 = vpop.f32.mrf.mxu0
        %v538 = vadd.f32 %v466, %v537
        %v539 = vpop.f32.mrf.mxu0
        %540 = vdwg.mxu0
        %v541 = vmul.f32 %v538, 0.25
        %543 = vrot.lane.b32.xlu0 %v538, 112
        %v544 = vpop.permute.xlu0 %543
        %v546 = vsel %vm214, %v541, 0
        %v548 = vsel %vm214, %v544, 0
        %550 = vmatprep.subr.mxu0 0.0
        %551 = vmatpush1.xpose.msra.mxu0 0.0
        %552 = vmatprep.subr.mxu0 0.0
        %553 = vmatpush1.xpose.msra.mxu0 0.0
        %554 = vmatprep.subr.mxu0 0.0
        %555 = vmatpush1.xpose.msra.mxu0 0.0
        %556 = vmatprep.subr.mxu0 0.0
        %557 = vmatpush1.xpose.msra.mxu0 0.0
        %558 = vmatprep.subr.mxu0 0.0
        %559 = vmatpush1.xpose.msra.mxu0 0.0
        %560 = vmatprep.subr.mxu0 0.0
        %561 = vmatpush1.xpose.msra.mxu0 0.0
        %562 = vmatprep.subr.mxu0 0.0
        %563 = vmatpush1.xpose.msra.mxu0 0.0
        %564 = vmatprep.subr.mxu0 0.0
        %565 = vmatpush1.xpose.msra.mxu0 0.0
        %566 = vmatprep.subr.mxu0 0.0
        %567 = vmatpush1.xpose.msra.mxu0 0.0
        %568 = vmatprep.subr.mxu0 0.0
        %569 = vmatpush1.xpose.msra.mxu0 0.0
        %570 = vmatprep.subr.mxu0 0.0
        %571 = vmatpush1.xpose.msra.mxu0 0.0
        %572 = vmatprep.subr.mxu0 0.0
        %573 = vmatpush1.xpose.msra.mxu0 0.0
        %574 = vmatprep.subr.mxu0 0.0
        %575 = vmatpush1.xpose.msra.mxu0 0.0
        %576 = vmatprep.subr.mxu0 0.0
        %577 = vmatpush1.xpose.msra.mxu0 0.0
        %578 = vmatprep.subr.mxu0 0.0
        %579 = vmatpush1.xpose.msra.mxu0 0.0
        %580 = vmatprep.subr.mxu0 0.0
        %581 = vmatpush1.xpose.msra.mxu0 %v548
        %582 = vmatprep.subr.mxu0 0.0
        %583 = vmatpush2.xpose.msra.mxu0 0.0
        %584 = vmatprep.subr.mxu0 0.0
        %585 = vmatpush2.xpose.msra.mxu0 0.0
        %586 = vmatprep.subr.mxu0 0.0
        %587 = vmatpush2.xpose.msra.mxu0 0.0
        %588 = vmatprep.subr.mxu0 0.0
        %589 = vmatpush2.xpose.msra.mxu0 0.0
        %590 = vmatprep.subr.mxu0 0.0
        %591 = vmatpush2.xpose.msra.mxu0 0.0
        %592 = vmatprep.subr.mxu0 0.0
        %593 = vmatpush2.xpose.msra.mxu0 0.0
        %594 = vmatprep.subr.mxu0 0.0
        %595 = vmatpush2.xpose.msra.mxu0 0.0
        %596 = vmatprep.subr.mxu0 0.0
        %597 = vmatpush2.xpose.msra.mxu0 0.0
        %598 = vmatprep.subr.mxu0 0.0
        %599 = vmatpush2.xpose.msra.mxu0 0.0
        %600 = vmatprep.subr.mxu0 0.0
        %601 = vmatpush2.xpose.msra.mxu0 0.0
        %602 = vmatprep.subr.mxu0 0.0
        %603 = vmatpush2.xpose.msra.mxu0 0.0
        %604 = vmatprep.subr.mxu0 0.0
        %605 = vmatpush2.xpose.msra.mxu0 0.0
        %606 = vmatprep.subr.mxu0 0.0
        %607 = vmatpush2.xpose.msra.mxu0 0.0
        %608 = vmatprep.subr.mxu0 0.0
        %609 = vmatpush2.xpose.msra.mxu0 0.0
        %610 = vmatprep.subr.mxu0 0.0
        %611 = vmatpush2.xpose.msra.mxu0 0.0
        %612 = vmatprep.subr.mxu0 0.0
        %613 = vmatpush2.xpose.msra.mxu0 0.0
        %614 = vmatprep.mubr.f32.mxu0 0.0
        %615 = vmatmul.mubr.f32.gmra.mxu0 %v546
        %v616 = vpop.f32.mrf.mxu0
        %v617 = vadd.f32 0.0, %v616
        %v618 = vpop.f32.mrf.mxu0
        %619 = vdwg.mxu0
        %v620 = vsel %vm367, %v617, -inf
        %621 = vmax.xlane.f32.xlu0 %v620
        %v622 = vpop.xlane.xlu0 %621
        %v623 = vsub.f32 %v617, %v622
        %v624 = vmul.f32 %v623, 1.442695
        %v625 = vpow.pop %v624
        %v626 = vsel %vm367, %v625, 0.0
        %627 = vadd.xlane.f32.xlu0 %v626
        %v628 = vpop.xlane.xlu0 %627
        %v629 = vrcp.pop %v628
        %v630 = vmul.f32 %v625, %v629
        %631 = vrot.lane.b32.xlu0 %v538, 96
        %v632 = vpop.permute.xlu0 %631
        %v635 = vsel %vm367, %v630, 0
        %637 = vmatprep.subr.mxu0 0.0
        %638 = vmatpush1.msra.mxu0 0.0
        %639 = vmatprep.subr.mxu0 0.0
        %640 = vmatpush1.msra.mxu0 0.0
        %641 = vmatprep.subr.mxu0 0.0
        %642 = vmatpush1.msra.mxu0 0.0
        %643 = vmatprep.subr.mxu0 0.0
        %644 = vmatpush1.msra.mxu0 0.0
        %645 = vmatprep.subr.mxu0 0.0
        %646 = vmatpush1.msra.mxu0 0.0
        %647 = vmatprep.subr.mxu0 0.0
        %648 = vmatpush1.msra.mxu0 0.0
        %649 = vmatprep.subr.mxu0 0.0
        %650 = vmatpush1.msra.mxu0 0.0
        %651 = vmatprep.subr.mxu0 0.0
        %652 = vmatpush1.msra.mxu0 0.0
        %653 = vmatprep.subr.mxu0 0.0
        %654 = vmatpush1.msra.mxu0 0.0
        %655 = vmatprep.subr.mxu0 0.0
        %656 = vmatpush1.msra.mxu0 0.0
        %657 = vmatprep.subr.mxu0 0.0
        %658 = vmatpush1.msra.mxu0 0.0
        %659 = vmatprep.subr.mxu0 0.0
        %660 = vmatpush1.msra.mxu0 0.0
        %661 = vmatprep.subr.mxu0 0.0
        %662 = vmatpush1.msra.mxu0 0.0
        %663 = vmatprep.subr.mxu0 0.0
        %664 = vmatpush1.msra.mxu0 0.0
        %665 = vmatprep.subr.mxu0 0.0
        %666 = vmatpush1.msra.mxu0 0.0
        %667 = vmatprep.subr.mxu0 0.0
        %668 = vmatpush1.msra.mxu0 %v632
        %669 = vmatprep.subr.mxu0 0.0
        %670 = vmatpush2.msra.mxu0 0.0
        %671 = vmatprep.subr.mxu0 0.0
        %672 = vmatpush2.msra.mxu0 0.0
        %673 = vmatprep.subr.mxu0 0.0
        %674 = vmatpush2.msra.mxu0 0.0
        %675 = vmatprep.subr.mxu0 0.0
        %676 = vmatpush2.msra.mxu0 0.0
        %677 = vmatprep.subr.mxu0 0.0
        %678 = vmatpush2.msra.mxu0 0.0
        %679 = vmatprep.subr.mxu0 0.0
        %680 = vmatpush2.msra.mxu0 0.0
        %681 = vmatprep.subr.mxu0 0.0
        %682 = vmatpush2.msra.mxu0 0.0
        %683 = vmatprep.subr.mxu0 0.0
        %684 = vmatpush2.msra.mxu0 0.0
        %685 = vmatprep.subr.mxu0 0.0
        %686 = vmatpush2.msra.mxu0 0.0
        %687 = vmatprep.subr.mxu0 0.0
        %688 = vmatpush2.msra.mxu0 0.0
        %689 = vmatprep.subr.mxu0 0.0
        %690 = vmatpush2.msra.mxu0 0.0
        %691 = vmatprep.subr.mxu0 0.0
        %692 = vmatpush2.msra.mxu0 0.0
        %693 = vmatprep.subr.mxu0 0.0
        %694 = vmatpush2.msra.mxu0 0.0
        %695 = vmatprep.subr.mxu0 0.0
        %696 = vmatpush2.msra.mxu0 0.0
        %697 = vmatprep.subr.mxu0 0.0
        %698 = vmatpush2.msra.mxu0 0.0
        %699 = vmatprep.subr.mxu0 0.0
        %700 = vmatpush2.msra.mxu0 0.0
        %701 = vmatprep.mubr.f32.mxu0 0.0
        %702 = vmatmul.mubr.f32.gmra.mxu0 %v635
        %v703 = vpop.f32.mrf.mxu0
        %v704 = vadd.f32 0.0, %v703
        %v705 = vpop.f32.mrf.mxu0
        %706 = vdwg.mxu0
        %708 = vrot.lane.b32.xlu0 %v704, 16
        %v709 = vpop.permute.xlu0 %708
        %v711 = vsel %vm214, %v452, %v709
        %vm712 = vcmask 261120
        %713 = vst.msk [vmem:[%s203] sm:$0xff] %vm712, %v711
        %s714 = sand.u32 %s97, 1
        %s715 = scalar_lea.sflag [#allocation4], %s714
        %s716 = sand.u32 %s97, 1
        %s717 = smul.addr %s716, 8
        %s718 = scalar_lea.vmem [#allocation7], %s717
        // Predicated region
        $region41: #{tpu_custom_call.1} parent=31 // pred_check
          %p719 = pneg %p107
        $region42: #{tpu_custom_call.1} parent=31 // pred_check_branch
          %721 = sbr.rel (%p719) target = $region44
        $region43: #{tpu_custom_call.1} parent=31 // pred_region
          %s723 = ssub.s32 128, 128
          %724 = vsyncadd %s715, %s723
          %s725 = smul.addr %s21, 128
          %s726 = scalar_lea.hbm %s3, %s725
          %s728 = sshll.u32 %s718, 4
          %s729 = int_to_ptr.vmem [resolvable:$true] %s728
          %731 = dma.vmem_to_hbm [thread:$0]  %s729, 128, %s726, %s715
        $region44: #{tpu_custom_call.1} parent=31 // pred_fallthru
          _
      $region32: #{tpu_custom_call.1} parent=5 // pred_fallthru
        _
      %p732 = scmp.le.s32.totalorder 2, %s16
      // Predicated region
      $region45: #{tpu_custom_call.1} parent=5 // pred_check
        %p733 = pneg %p732
      $region46: #{tpu_custom_call.1} parent=5 // pred_check_branch
        %735 = sbr.rel (%p733) target = $region48
      $region47: #{tpu_custom_call.1} parent=5 // pred_region
        %s736 = ssub.s32 %s16, 2
        // Predicated region
        $region49: #{tpu_custom_call.1} parent=47 // pred_check
          %p737 = pneg %p113
        $region50: #{tpu_custom_call.1} parent=47 // pred_check_branch
          %739 = sbr.rel (%p737) target = $region52
        $region51: #{tpu_custom_call.1} parent=47 // pred_region
          %s740 = sand.u32 %s98, 1
          %s741 = scalar_lea.sflag [#allocation4], %s740
          %s742 = sand.u32 %s98, 1
          %s743 = smul.addr %s742, 8
          %s744 = scalar_lea.vmem [#allocation7], %s743
          %745 = dma.done %s741, 128
        $region52: #{tpu_custom_call.1} parent=47 // pred_fallthru
          _
      $region48: #{tpu_custom_call.1} parent=5 // pred_fallthru
        _
    $region6: #{tpu_custom_call.1} parent=1 // loop_footer
      %s20 = sadd.s32 1, %s16
    $region7: #{tpu_custom_call.1} parent=1 // loop_footer_branch
      %15 = sbr.rel target = $region3
    $region8: #{tpu_custom_call.1} parent=1 // loop_exit
      _
    %746 = vsyncpa [#allocation3], 1
    %s747 = scalar_lea.sflag [#allocation3], 1
    %748 = vsyncpa %s747, 1
    %749 = vsyncpa [#allocation6], 1
    %750 = vsyncpa [#allocation4], 1
    %s751 = scalar_lea.sflag [#allocation4], 1
    %752 = vsyncpa %s751, 1

</llo_original>
